<compile_context>
chip_gen: v6e
topology: v6e:2x2x1
jax: 0.10.0
libtpu: 0.0.40
codegen_flags: <defaults>
</compile_context>

<pallas_src>
import functools

import jax
import jax.numpy as jnp
from jax.experimental import pallas as pl
from jax.experimental.pallas import tpu as pltpu

MASK = -1.0

_MAX_ROW_TILE = 4096       # input tiles are multi-MiB well before this
_TARGET_GRID_STEPS = 8     # megacore sharding (v7x) + pipeline ramp


def _softmax_pool_kernel(s_ref, o_ref, *, inv_temperature):
    # s_ref: (tr, N) tile of similarities; o_ref: (tr, 1) pooled output.
    s_in = s_ref[...]
    # bf16 fast path (bf16 VPU/EUP on v6e/v7x): keep mask/max/exp in bf16 and
    # only accumulate the two row sums in f32.  Other dtypes upcast to f32.
    compute_dtype = jnp.bfloat16 if s_in.dtype == jnp.bfloat16 else jnp.float32
    s = s_in.astype(compute_dtype)
    # sims[sims == MASK] = -inf   (the -1.0 compare is exact in bf16/f32)
    s = jnp.where(s == MASK, -jnp.inf, s)
    # softmax(s / t) computed as exp((s - max(s)) * (1/t)) -- constant multiply
    # instead of a per-element divide.
    m = jnp.max(s, axis=-1, keepdims=True)
    e = jnp.exp((s - m) * inv_temperature)
    # Fused normalization in f32: (softmax(z) * s).sum = sum(e*s) / sum(e).
    e32 = e.astype(jnp.float32)
    s32 = s.astype(jnp.float32)
    num = jnp.sum(e32 * s32, axis=-1, keepdims=True)
    den = jnp.sum(e32, axis=-1, keepdims=True)
    pooled = num * pl.reciprocal(den, approx=False)  # exact recip keeps 1e-5 tol
    o_ref[...] = pooled.astype(o_ref.dtype)


def _round_up(x, m):
    return ((x + m - 1) // m) * m


def _vmem_budgets():
    """(vmem_limit_bytes, tile_budget_bytes), sized per TPU generation."""
    phys = 64 * 1024 * 1024                      # conservative default (v7x-class)
    try:
        phys = int(pltpu.get_tpu_info().vmem_capacity_bytes)
    except Exception:
        pass
    if phys >= 100 * 1024 * 1024:                # v5e / v6e (128 MiB physical VMEM)
        return 64 * 1024 * 1024, 40 * 1024 * 1024
    return 40 * 1024 * 1024, 24 * 1024 * 1024    # v7x (64 MiB / TC) or unknown


def _choose_row_tile(R, N, itemsize, tile_budget_bytes):
    """Row tile: dtype-aligned, VMEM-safe (inputs + f32 temporaries), and small
    enough that the 1-D grid has ~8 steps for megacore/pipeline ramp."""
    row_align = max(8, 32 // itemsize)           # 8 rows f32, 16 rows bf16
    # Resident per row: double-buffered input tile + ~3 tile-sized f32
    # temporaries (masked s, e, e*s) materialized by the kernel body.
    bytes_per_row = 2 * N * itemsize + 3 * N * 4
    tr = tile_budget_bytes // bytes_per_row
    tr = min(tr, _MAX_ROW_TILE)
    tr = min(tr, _round_up(pl.cdiv(R, _TARGET_GRID_STEPS), row_align))
    tr = min(tr, _round_up(R, row_align))        # never bigger than the problem
    tr = max(row_align, (tr // row_align) * row_align)
    return tr


def softmax_pooling(sims: jax.Array, temperature: float = 0.1) -> jax.Array:
    """sims: (B, S, N) float array. Returns (B, S)."""
    B, S, N = sims.shape
    R = B * S
    flat = sims.reshape(R, N)

    itemsize = jnp.dtype(sims.dtype).itemsize
    vmem_limit, tile_budget = _vmem_budgets()
    tr = _choose_row_tile(R, N, itemsize, tile_budget)
    num_tiles = pl.cdiv(R, tr)

    kernel = functools.partial(
        _softmax_pool_kernel, inv_temperature=1.0 / float(temperature)
    )

    # No input padding: the final input block may be partial (Pallas masks the
    # DMA); rows are fully independent so garbage rows only produce garbage
    # outputs that are never written back beyond R (partial output block).
    out_flat = pl.pallas_call(
        kernel,
        out_shape=jax.ShapeDtypeStruct((R, 1), sims.dtype),
        grid_spec=pl.GridSpec(
            grid=(num_tiles,),
            in_specs=[pl.BlockSpec((tr, N), lambda i: (i, 0))],
            out_specs=pl.BlockSpec((tr, 1), lambda i: (i, 0)),
        ),
        compiler_params=pltpu.CompilerParams(
            dimension_semantics=("parallel",),   # row axis shards across TCs on v7x
            vmem_limit_bytes=vmem_limit,
        ),
    )(flat)

    return out_flat[:, 0].reshape(B, S)


def _reference(sims, temperature=0.1):
    s = jnp.where(sims == MASK, -jnp.inf, sims)
    w = jax.nn.softmax(s / temperature, axis=-1)
    return jnp.sum(w * s, axis=-1)


def _check(out, ref, atol, rtol):
    # Masked rows produce NaN in both (0 * -inf), matching PyTorch exactly;
    # compare the finiteness pattern and values on finite entries.
    finite = jnp.isfinite(ref)
    assert bool(jnp.all(jnp.isfinite(out) == finite))
    assert bool(
        jnp.allclose(
            jnp.where(finite, out, 0.0).astype(jnp.float32),
            jnp.where(finite, ref, 0.0).astype(jnp.float32),
            atol=atol,
            rtol=rtol,
        )
    )


if __name__ == "__main__":
    key = jax.random.PRNGKey(0)
    k0, k1, k2, k3 = jax.random.split(key, 4)

    # Small demo shape with masking (single-ish tile).
    B, S, N = 2, 8, 128
    sims = jax.random.normal(k0, (B, S, N), dtype=jnp.float32)
    sims = sims.at[0, 0, :4].set(MASK)   # exercise the masking branch
    sims = sims.at[1, 3, 10].set(MASK)
    out = jax.block_until_ready(softmax_pooling(sims, temperature=0.1))
    assert out.shape == (B, S), out.shape
    _check(out, _reference(sims), atol=1e-5, rtol=1e-5)

    # Ragged grid: R = 3*700 = 2100 rows (not a multiple of the tile, nor of 8)
    # -> exercises the partial final input block with NO jnp.pad of the input.
    B2, S2 = 3, 700
    sims2 = jax.random.normal(k1, (B2, S2, N), dtype=jnp.float32)
    out2 = jax.block_until_ready(softmax_pooling(sims2, temperature=0.1))
    assert out2.shape == (B2, S2)
    _check(out2, _reference(sims2), atol=1e-5, rtol=1e-5)

    # Non-multiple-of-128 N: lane padding must be masked in the row reductions.
    B3, S3, N3 = 2, 24, 96
    sims3 = jax.random.normal(k2, (B3, S3, N3), dtype=jnp.float32)
    sims3 = sims3.at[0, 5, :3].set(MASK)
    out3 = jax.block_until_ready(softmax_pooling(sims3, temperature=0.1))
    assert out3.shape == (B3, S3)
    _check(out3, _reference(sims3), atol=1e-5, rtol=1e-5)

    # bf16 inputs take the low-precision exp path (f32 accumulation); compare
    # against an f32 reference on the bf16-rounded inputs with a loose bound.
    sims4 = jax.random.normal(k3, (2, 64, N), dtype=jnp.bfloat16)
    sims4 = sims4.at[0, 0, :8].set(MASK)
    out4 = jax.block_until_ready(softmax_pooling(sims4, temperature=0.1))
    _check(out4.astype(jnp.float32), _reference(sims4.astype(jnp.float32)),
           atol=1e-1, rtol=1e-1)

    print("KERNEL_OK")
</pallas_src>

<mosaic_0001>
module attributes {stable_mosaic.version = 11 : i64} {
  func.func @_softmax_pool_kernel(%arg0: i32, %arg1: memref<8x128xf32, #tpu.memory_space<vmem>>, %arg2: memref<8x1xf32, #tpu.memory_space<vmem>>) attributes {dimension_semantics = [#tpu.dimension_semantics<parallel>], iteration_bounds = array<i64: 2>, scalar_prefetch = 0 : i64, scratch_operands = 0 : i64, tpu.core_type = #tpu.core_type<tc>, window_params = [{transform_indices = @transform_0, window_bounds = array<i64: 8, 128>}, {transform_indices = @transform_1, window_bounds = array<i64: 8, 1>}]} {
    %c0 = arith.constant 0 : index
    %c0_0 = arith.constant 0 : index
    %0 = vector.load %arg1[%c0, %c0_0] : memref<8x128xf32, #tpu.memory_space<vmem>>, vector<8x128xf32>
    %cst = arith.constant -1.000000e+00 : f32
    %1 = vector.broadcast %cst : f32 to vector<8x128xf32>
    %2 = arith.cmpf oeq, %0, %1 : vector<8x128xf32>
    %cst_1 = arith.constant 0xFF800000 : f32
    %3 = vector.broadcast %cst_1 : f32 to vector<8x128xf32>
    %4 = arith.select %2, %3, %0 : vector<8x128xi1>, vector<8x128xf32>
    %cst_2 = arith.constant dense<0xFF800000> : vector<8xf32>
    %5 = vector.multi_reduction <maximumf>, %4, %cst_2 [1] : vector<8x128xf32> to vector<8xf32>
    %6 = vector.shape_cast %5 : vector<8xf32> to vector<8x1xf32>
    %7 = vector.broadcast %6 : vector<8x1xf32> to vector<8x128xf32>
    %8 = arith.subf %4, %7 : vector<8x128xf32>
    %cst_3 = arith.constant 1.000000e+01 : f32
    %9 = vector.broadcast %cst_3 : f32 to vector<8x128xf32>
    %10 = arith.mulf %8, %9 : vector<8x128xf32>
    %11 = math.exp %10 : vector<8x128xf32>
    %12 = arith.mulf %11, %4 : vector<8x128xf32>
    %cst_4 = arith.constant dense<0.000000e+00> : vector<8xf32>
    %13 = vector.multi_reduction <add>, %12, %cst_4 [1] : vector<8x128xf32> to vector<8xf32>
    %14 = vector.shape_cast %13 : vector<8xf32> to vector<8x1xf32>
    %cst_5 = arith.constant dense<0.000000e+00> : vector<8xf32>
    %15 = vector.multi_reduction <add>, %11, %cst_5 [1] : vector<8x128xf32> to vector<8xf32>
    %16 = vector.shape_cast %15 : vector<8xf32> to vector<8x1xf32>
    %17 = tpu.reciprocal %16 : vector<8x1xf32> -> vector<8x1xf32>
    %18 = arith.mulf %14, %17 : vector<8x1xf32>
    %c0_6 = arith.constant 0 : index
    %c0_7 = arith.constant 0 : index
    %19 = vector.load %arg2[%c0_6, %c0_7] : memref<8x1xf32, #tpu.memory_space<vmem>>, vector<8x1xf32>
    tpu.vector_store %arg2[%c0_6, %c0_7], %18 {strides = array<i32>} : memref<8x1xf32, #tpu.memory_space<vmem>>, vector<8x1xf32>,
    return
  }
  func.func @transform_0(%arg0: i32) -> (i32, i32) {
    %c0_i32 = arith.constant 0 : i32
    %c0_i32_0 = arith.constant 0 : i32
    return %arg0, %c0_i32 : i32, i32
  }
  func.func @transform_1(%arg0: i32) -> (i32, i32) {
    %c0_i32 = arith.constant 0 : i32
    %c0_i32_0 = arith.constant 0 : i32
    return %arg0, %c0_i32 : i32, i32
  }
}

</mosaic_0001>

<llo_original>
// kernel: tpu_custom_call.1
$region0: #{tpu_custom_call.1}
  #allocation0 [shape = 'u32[]', space=smem, size = 0x4, offset = 0x4, fixed_abs, tag = 'smem constant byte address 0x4 - core index']
  #allocation1 [shape = 'u32[144,128]{1,0:T(1,128)}', space=vmem, size = 0x12000, scoped, tag = 'internal scratch']
  %s0 = inlined_call_operand.hbm [shape: f32[16,128], index: 0, kind: input, shape index: {}]
  %s1 = inlined_call_operand.vmem [shape: f32[16,1], index: 1, kind: output, shape index: {}]
  %s2 = sld [smem:[#allocation0]]
  $region41: #{tpu_custom_call.1} parent=0
    _
  %s4 = ssub.s32 1, %s2
  %s5 = scalar_select 0, %s4, %s2
  $region1: #{tpu_custom_call.1} parent=0
    #allocation2 [shape = 'u8[8192]{0}', space=vmem, size = 0x2000, scoped, tag = 'input window, operand 0']
    #allocation3 [shape = 's32[2]{0}', space=sflag, size = 0x8, scoped, tag = 'scoped memory for tpu_custom_call.1']
    %6 = vsyncpa [#allocation3], 0
    %s7 = scalar_lea.sflag [#allocation3], 1
    %8 = vsyncpa %s7, 0
    loop: start=0, step=1, limit=4
    $region2: #{tpu_custom_call.1} parent=1 // loop_pre_header
      _
    $region3: #{tpu_custom_call.1} parent=1 // loop_header
      %s10 = sphi 0, %s14
      %p11 = scmp.ge.s32.totalorder %s10, 4
      %s20 = sphi 0, %s22
      %s23 = sphi 0, %s20
      %s24 = sphi 0, %s23
      %s40 = sphi 0, %s24
      %s46 = sphi 0, %s48
      %s49 = sphi 0, %s46
      %s50 = sphi 0, %s49
      %s66 = sphi 0, %s50
    $region4: #{tpu_custom_call.1} parent=1 // loop_header_branch
      %13 = sbr.rel (%p11) target = $region8
    $region5: #{tpu_custom_call.1} parent=1 // loop_body
      %s15 = ssub.s32 %s10, 1
      %s16 = ssub.s32 %s10, 2
      %s17 = sadd.s32 %s10, 1
      %s18 = ssub.s32 %s10, %s17
      %p19 = scmp.eq.s32.totalorder %s18, 0
      %s21 = sadd.s32 %s20, 1
      %s22 = scalar_select %p19, %s20, %s21
      %p25 = pneg %p19
      %p26 = scmp.eq.s32.totalorder %s10, 1
      %p27 = por %p25, %p26
      %p28 = scmp.ne.s32.totalorder %s20, %s23
      %p29 = scmp.eq.s32.totalorder %s10, 0
      %p30 = por %p28, %p29
      %p31 = scmp.ne.s32.totalorder %s20, %s23
      %p32 = scmp.eq.s32.totalorder %s15, 1
      %p33 = por %p31, %p32
      %p34 = scmp.ne.s32.totalorder %s23, %s24
      %p35 = scmp.eq.s32.totalorder %s15, 0
      %p36 = por %p34, %p35
      %p37 = scmp.ne.s32.totalorder %s23, %s24
      %p38 = scmp.eq.s32.totalorder %s16, 1
      %p39 = por %p37, %p38
      %p41 = scmp.ne.s32.totalorder %s24, %s40
      %p42 = scmp.eq.s32.totalorder %s16, 0
      %p43 = por %p41, %p42
      %s44 = ssub.s32 %s10, %s17
      %p45 = scmp.eq.s32.totalorder %s44, 0
      %s47 = sadd.s32 %s46, 1
      %s48 = scalar_select %p45, %s46, %s47
      %p51 = pneg %p45
      %p52 = scmp.eq.s32.totalorder %s10, 1
      %p53 = por %p51, %p52
      %p54 = scmp.ne.s32.totalorder %s46, %s49
      %p55 = scmp.eq.s32.totalorder %s10, 0
      %p56 = por %p54, %p55
      %p57 = scmp.ne.s32.totalorder %s46, %s49
      %p58 = scmp.eq.s32.totalorder %s15, 1
      %p59 = por %p57, %p58
      %p60 = scmp.ne.s32.totalorder %s49, %s50
      %p61 = scmp.eq.s32.totalorder %s15, 0
      %p62 = por %p60, %p61
      %p63 = scmp.ne.s32.totalorder %s49, %s50
      %p64 = scmp.eq.s32.totalorder %s16, 1
      %p65 = por %p63, %p64
      %p67 = scmp.ne.s32.totalorder %s50, %s66
      %p68 = scmp.eq.s32.totalorder %s16, 0
      %p69 = por %p67, %p68
      %p70 = scmp.le.s32.totalorder 1, %s10
      %p71 = scmp.lt.s32.totalorder %s10, 3
      %p72 = pnand %p70, %p71
      %p73 = pneg %p72
      // Predicated region
      $region9: #{tpu_custom_call.1} parent=5 // pred_check
        _
      $region10: #{tpu_custom_call.1} parent=5 // pred_check_branch
        %75 = sbr.rel (%p72) target = $region12
      $region11: #{tpu_custom_call.1} parent=5 // pred_region
        %s76 = ssub.s32 %s10, 1
      $region12: #{tpu_custom_call.1} parent=5 // pred_fallthru
        _
      %p77 = scmp.lt.s32.totalorder %s10, 2
      // Predicated region
      $region13: #{tpu_custom_call.1} parent=5 // pred_check
        %p78 = pneg %p77
      $region14: #{tpu_custom_call.1} parent=5 // pred_check_branch
        %80 = sbr.rel (%p78) target = $region16
      $region15: #{tpu_custom_call.1} parent=5 // pred_region
        // Predicated region
        $region17: #{tpu_custom_call.1} parent=15 // pred_check
          %p81 = pneg %p30
        $region18: #{tpu_custom_call.1} parent=15 // pred_check_branch
          %83 = sbr.rel (%p81) target = $region20
        $region19: #{tpu_custom_call.1} parent=15 // pred_region
          %s84 = sand.u32 %s20, 1
          %s85 = scalar_lea.sflag [#allocation3], %s84
          %s86 = sand.u32 %s20, 1
          %s87 = smul.addr %s86, 8
          %s88 = scalar_lea.vmem [#allocation2], %s87
          %s90 = ssub.s32 128, 128
          %91 = vsyncadd %s85, %s90
          %s92 = smul.addr %s10, 128
          %s93 = scalar_lea.hbm %s0, %s92
          %s95 = sshll.u32 %s88, 4
          %s96 = int_to_ptr.vmem [resolvable:$true] %s95
          %98 = dma.hbm_to_vmem [thread:$0]  %s93, 128, %s96, %s85
        $region20: #{tpu_custom_call.1} parent=15 // pred_fallthru
          _
      $region16: #{tpu_custom_call.1} parent=5 // pred_fallthru
        _
      %p99 = scmp.le.s32.totalorder 1, %s10
      %p100 = scmp.lt.s32.totalorder %s10, 3
      %p101 = pnand %p99, %p100
      %p102 = pneg %p101
      // Predicated region
      $region21: #{tpu_custom_call.1} parent=5 // pred_check
        _
      $region22: #{tpu_custom_call.1} parent=5 // pred_check_branch
        %104 = sbr.rel (%p101) target = $region24
      $region23: #{tpu_custom_call.1} parent=5 // pred_region
        %s105 = ssub.s32 %s10, 1
        %s106 = sand.u32 %s23, 1
        %s107 = scalar_lea.sflag [#allocation3], %s106
        %s108 = sand.u32 %s23, 1
        %s109 = smul.addr %s108, 8
        %s110 = scalar_lea.vmem [#allocation2], %s109
        // Predicated region
        $region25: #{tpu_custom_call.1} parent=23 // pred_check
          %p111 = pneg %p36
        $region26: #{tpu_custom_call.1} parent=23 // pred_check_branch
          %113 = sbr.rel (%p111) target = $region28
        $region27: #{tpu_custom_call.1} parent=23 // pred_region
          %114 = dma.done %s107, 128
        $region28: #{tpu_custom_call.1} parent=23 // pred_fallthru
          _
        %s115 = sand.u32 %s23, 1
        %s116 = scalar_lea.sflag [#allocation3], %s115
        %s117 = sand.u32 %s23, 1
        %s118 = smul.addr %s117, 8
        %s119 = scalar_lea.vmem [#allocation2], %s118
        %p120 = pneg %p36
        %p121 = pneg %p33
        %p122 = pneg %p62
        %p123 = pneg %p59
        %p124 = scmp.lt.s32.totalorder %s15, 1
        %s125 = scalar_select %p124, %s15, 1
        %s126 = smul.addr %s125, 8
        %s127 = scalar_lea.vmem %s1, %s126
        %p128 = scmp.lt.s32.totalorder %s15, 1
        %s129 = scalar_select %p128, %s15, 1
        %s130 = smul.addr %s129, 8
        %s131 = scalar_lea.vmem %s1, %s130
        %v132 = vld [vmem:[%s110] sm:$0xff]
        %vm133 = vcmp.eq.f32.partialorder %v132, -1.0
        %v134 = vsel %vm133, -inf, %v132
        %135 = vmax.xlane.f32.xlu0 %v134
        %v136 = vpop.xlane.xlu0 %135
        %v137 = vsub.f32 %v134, %v136
        %v138 = vmul.f32 %v137, 10.0
        %v139 = vmul.f32 %v138, 1.442695
        %v140 = vpow.pop %v139
        %v141 = vmul.f32 %v140, %v134
        %142 = vadd.xlane.f32.xlu0 %v141
        %v143 = vpop.xlane.xlu0 %142
        %144 = vadd.xlane.f32.xlu0 %v140
        %v145 = vpop.xlane.xlu0 %144
        %v146 = vrcp.pop %v145
        %v147 = vmul.f32 %v143, %v146
        %vm148 = vcmask 7168
        %149 = vst.msk [vmem:[%s131] sm:$0xff] %vm148, %v147
        %p150 = scmp.lt.s32.totalorder %s15, 1
        %s151 = scalar_select %p150, %s15, 1
        %s152 = smul.addr %s151, 8
        %s153 = scalar_lea.vmem %s1, %s152
        // Predicated region
        $region29: #{tpu_custom_call.1} parent=23 // pred_check
          %p154 = pneg %p59
        $region30: #{tpu_custom_call.1} parent=23 // pred_check_branch
          %156 = sbr.rel (%p154) target = $region32
        $region31: #{tpu_custom_call.1} parent=23 // pred_region
          _
        $region32: #{tpu_custom_call.1} parent=23 // pred_fallthru
          _
      $region24: #{tpu_custom_call.1} parent=5 // pred_fallthru
        _
      %p157 = scmp.le.s32.totalorder 2, %s10
      // Predicated region
      $region33: #{tpu_custom_call.1} parent=5 // pred_check
        %p158 = pneg %p157
      $region34: #{tpu_custom_call.1} parent=5 // pred_check_branch
        %160 = sbr.rel (%p158) target = $region36
      $region35: #{tpu_custom_call.1} parent=5 // pred_region
        %s161 = ssub.s32 %s10, 2
        // Predicated region
        $region37: #{tpu_custom_call.1} parent=35 // pred_check
          %p162 = pneg %p65
        $region38: #{tpu_custom_call.1} parent=35 // pred_check_branch
          %164 = sbr.rel (%p162) target = $region40
        $region39: #{tpu_custom_call.1} parent=35 // pred_region
          %p165 = scmp.lt.s32.totalorder %s16, 1
          %s166 = scalar_select %p165, %s16, 1
          %s167 = smul.addr %s166, 8
          %s168 = scalar_lea.vmem %s1, %s167
        $region40: #{tpu_custom_call.1} parent=35 // pred_fallthru
          _
      $region36: #{tpu_custom_call.1} parent=5 // pred_fallthru
        _
    $region6: #{tpu_custom_call.1} parent=1 // loop_footer
      %s14 = sadd.s32 1, %s10
    $region7: #{tpu_custom_call.1} parent=1 // loop_footer_branch
      %9 = sbr.rel target = $region3
    $region8: #{tpu_custom_call.1} parent=1 // loop_exit
      _
    %169 = vsyncpa [#allocation3], 1
    %s170 = scalar_lea.sflag [#allocation3], 1
    %171 = vsyncpa %s170, 1

</llo_original>
